<compile_context>
chip_gen: v6e
topology: v6e:2x2x1
jax: 0.10.0
libtpu: 0.0.40
codegen_flags: <defaults>
</compile_context>

<pallas_src>
import functools
from typing import NamedTuple

import jax
import jax.numpy as jnp
from jax.experimental import pallas as pl
from jax.experimental.pallas import tpu as pltpu

_LANE = 128            # vreg lane width: last-dim blocks must be 128-multiples
_MXU = 256             # v6e/v7x MXU is 256x256 -> prefer 256-multiples for tile_ff
_MIB = 1024 * 1024


def _round_up(x, m):
    return -(-x // m) * m


# ---------------------------------------------------------------------------
# Hardware queries (with conservative fallbacks).
# ---------------------------------------------------------------------------
def _vmem_capacity_bytes():
    try:
        cap = int(pltpu.get_tpu_info().vmem_capacity_bytes)
        if cap > 0:
            return cap
    except Exception:
        pass
    try:
        kind = jax.devices()[0].device_kind.lower()
    except Exception:
        kind = ""
    if any(tag in kind for tag in ("v4", "v5", "v6")):
        return 128 * _MIB
    return 64 * _MIB      # conservative default; covers v7x's 64 MiB per TensorCore


def _num_tensorcores():
    try:
        dev = jax.devices()[0]
        n = getattr(dev, "num_cores", None)
        if n:
            return int(n)
        if "v7" in dev.device_kind.lower():
            return 2
    except Exception:
        pass
    return 1


# ---------------------------------------------------------------------------
# Tile planning.
# ---------------------------------------------------------------------------
def _ffn_working_set(tile_n, tile_ff, dp, isz, out_is_f32):
    """Estimated live VMEM bytes: double-buffered x/out/W1/W2/b1/b2 blocks, f32
    accumulator scratch (non-f32 outputs only) and the hidden-activation tile."""
    acc = 0 if out_is_f32 else tile_n * dp * 4
    fixed = 4 * tile_n * dp * isz + 2 * dp * isz + acc
    hid_bytes = 8 if out_is_f32 else 8 + isz          # f32 temps (+ down-cast copy)
    per_tf = 4 * dp * isz + 2 * isz + tile_n * hid_bytes
    return fixed + per_tf * tile_ff, fixed, per_tf


def _pick_tile_ff(fp_min, target):
    """Pick the ff-chunk width: as large as the budget target allows, in MXU-friendly
    256-multiples, padding dim_feedforward UP to a multiple of it while keeping the
    zero-padding overhead <= 12.5% (falls back to the least-padded candidate)."""
    target = max(_LANE, target)
    if fp_min <= target:
        return fp_min                                  # single chunk (128-multiple)
    if target < _MXU:
        return _LANE
    best_cand, best_fp = _MXU, _round_up(fp_min, _MXU)
    cand = (target // _MXU) * _MXU
    while cand >= _MXU:
        fp = _round_up(fp_min, cand)
        if (fp - fp_min) * 8 <= fp_min:
            return cand
        if fp < best_fp:
            best_fp, best_cand = fp, cand
        cand -= _MXU
    return best_cand


class FFNPlan(NamedTuple):
    model_dim: int
    dim_feedforward: int
    dp: int               # padded model_dim (lane multiple)
    fp: int               # padded dim_feedforward (multiple of tile_ff)
    sublane: int
    tile_n: int
    tile_ff: int
    vmem_limit_bytes: int


def make_ffn_plan(model_dim, dim_feedforward, dtype=jnp.float32, *,
                  n_rows_hint=4096, tile_n=None, tile_ff=None):
    """VMEM- and roofline-aware tile selection (per TPU generation)."""
    dtype = jnp.dtype(dtype)
    isz = dtype.itemsize
    sublane = max(8, 32 // isz)
    out_is_f32 = dtype == jnp.float32
    dp = _round_up(model_dim, _LANE)
    fp_min = _round_up(dim_feedforward, _LANE)

    cap = _vmem_capacity_bytes()
    if cap >= 96 * _MIB:                 # 128 MiB chips (v4 / v5e / v5p / v6e)
        budget = min(cap - 24 * _MIB, 104 * _MIB)
        tff_target = 2048
    else:                                # v7x: 64 MiB per TensorCore
        budget = max(min(cap - 16 * _MIB, 48 * _MIB), 8 * _MIB)
        tff_target = 1024

    # Token tile: start at the weight-streaming roofline target and shrink until
    # at least one 128-wide ff chunk fits in the budget.
    tn = tile_n if tile_n is not None else (1024 if isz <= 2 else 512)
    tn = max(sublane, _round_up(min(int(tn), max(int(n_rows_hint), 1)), sublane))
    while True:
        ws_min, fixed, per_tf = _ffn_working_set(tn, _LANE, dp, isz, out_is_f32)
        if ws_min <= budget or tn <= sublane:
            break
        tn = max(sublane, _round_up(tn // 2, sublane))

    max_tf = (budget - fixed) // per_tf if budget > fixed else _LANE
    max_tf = max(_LANE, int(max_tf))

    if tile_ff is not None:
        tff = max(_LANE, _round_up(int(tile_ff), _LANE))
    else:
        tff = _pick_tile_ff(fp_min, min(tff_target, max_tf))
    fp = _round_up(fp_min, tff)

    ws, _, _ = _ffn_working_set(tn, tff, dp, isz, out_is_f32)
    vmem_limit = min(max(ws + 8 * _MIB, 48 * _MIB), cap - 4 * _MIB)
    vmem_limit = int(max(vmem_limit, min(ws + 4 * _MIB, cap), 32 * _MIB))

    return FFNPlan(model_dim, dim_feedforward, dp, fp, sublane, tn, tff, vmem_limit)


# ---------------------------------------------------------------------------
# Parameter padding (hoist out of the per-call hot path).
# ---------------------------------------------------------------------------
def _pad_to(a, shape):
    pads = tuple((0, t - s) for s, t in zip(a.shape, shape))
    if any(p for _, p in pads):
        a = jnp.pad(a, pads)
    return a


def pad_ffn_params(plan, w1, b1, w2, b2):
    """Pad weights/biases once.  Zero padding is exact: padded input columns hit
    zero weight rows, padded hidden units have zero bias (relu/gelu(0)==0) and
    zero W2 rows, padded output columns carry zero bias and are sliced off."""
    w1p = _pad_to(w1, (plan.dp, plan.fp))
    b1p = _pad_to(b1.reshape(1, -1), (1, plan.fp))
    w2p = _pad_to(w2, (plan.fp, plan.dp))
    b2p = _pad_to(b2.reshape(1, -1), (1, plan.dp))
    return w1p, b1p, w2p, b2p


# ---------------------------------------------------------------------------
# Kernels.
# ---------------------------------------------------------------------------
def _apply_activation(h, activation):
    if activation == "relu":
        return jnp.maximum(h, 0.0)
    if activation == "gelu":          # exact erf GELU (torch.nn.GELU() default)
        return 0.5 * h * (1.0 + jax.lax.erf(h * 0.7071067811865476))
    if activation == "gelu_tanh":     # tanh approximation -> EUP, co-issues with MXU
        c = 0.7978845608028654        # sqrt(2/pi)
        return 0.5 * h * (1.0 + jnp.tanh(c * (h + 0.044715 * h * h * h)))
    raise NotImplementedError(activation)


def _ffn_kernel_direct(x_ref, w1_ref, b1_ref, w2_ref, b2_ref, o_ref, *, activation):
    """float32 output: accumulate partial products directly into the resident
    output block (no scratch accumulator)."""
    f = pl.program_id(1)

    @pl.when(f == 0)
    def _init():
        o_ref[...] = jnp.zeros_like(o_ref)

    x = x_ref[...]                                                  # native dtype
    h = jnp.dot(x, w1_ref[...], preferred_element_type=jnp.float32)
    h = _apply_activation(h + b1_ref[...].astype(jnp.float32), activation)
    # dropout: eval mode / p == 0 -> identity
    o_ref[...] += jnp.dot(h.astype(x.dtype), w2_ref[...],
                          preferred_element_type=jnp.float32)

    @pl.when(f == pl.num_programs(1) - 1)
    def _finalize():
        o_ref[...] += b2_ref[...].astype(jnp.float32)


def _ffn_kernel_acc(x_ref, w1_ref, b1_ref, w2_ref, b2_ref, o_ref, acc_ref, *,
                    activation):
    """Non-f32 (e.g. bf16) output: f32 VMEM scratch accumulator, cast on finalize."""
    f = pl.program_id(1)

    @pl.when(f == 0)
    def _init():
        acc_ref[...] = jnp.zeros_like(acc_ref)

    x = x_ref[...]
    h = jnp.dot(x, w1_ref[...], preferred_element_type=jnp.float32)
    h = _apply_activation(h + b1_ref[...].astype(jnp.float32), activation)
    # dropout: eval mode / p == 0 -> identity; cast back so the 2nd matmul runs at
    # native (bf16) MXU rate.
    acc_ref[...] += jnp.dot(h.astype(x.dtype), w2_ref[...],
                            preferred_element_type=jnp.float32)

    @pl.when(f == pl.num_programs(1) - 1)
    def _finalize():
        o_ref[...] = (acc_ref[...] + b2_ref[...].astype(jnp.float32)).astype(o_ref.dtype)


# ---------------------------------------------------------------------------
# Public wrapper.
# ---------------------------------------------------------------------------
def feed_forward_block(inputs, w1, b1, w2, b2, *, activation="relu",
                       dropout_rate=0.0, deterministic=True,
                       plan=None, padded_params=None, tile_n=None, tile_ff=None):
    """Pallas implementation of FeedForwardBlock.forward.

    inputs: (..., model_dim)            (e.g. (seq, batch, model_dim))
    w1: (model_dim, dim_feedforward)    b1: (dim_feedforward,)
    w2: (dim_feedforward, model_dim)    b2: (model_dim,)
    plan / padded_params: optional outputs of make_ffn_plan / pad_ffn_params to
    hoist tile planning and weight padding out of the hot path.
    """
    if dropout_rate != 0.0 and not deterministic:
        # TODO(synk): training-mode dropout via pltpu.prng_seed / prng_random_bits.
        raise NotImplementedError("training-mode dropout (p > 0) is not implemented")

    orig_shape = inputs.shape
    model_dim = orig_shape[-1]
    dim_ff = w1.shape[1]
    dtype = inputs.dtype

    x2d = inputs.reshape(-1, model_dim)
    n_rows = x2d.shape[0]

    if plan is None:
        plan = make_ffn_plan(model_dim, dim_ff, dtype, n_rows_hint=n_rows,
                             tile_n=tile_n, tile_ff=tile_ff)
    if padded_params is None:
        padded_params = pad_ffn_params(plan, w1, b1, w2, b2)
    w1p, b1p, w2p, b2p = padded_params

    dp, fp, tff, sublane = plan.dp, plan.fp, plan.tile_ff, plan.sublane

    # Finalize the token tile for this call's row count (only ever shrinks VMEM use).
    tn = max(sublane, min(plan.tile_n, _round_up(n_rows, sublane)))
    # On multi-TensorCore chips, make sure the "parallel" axis has >= 2 tiles so
    # short sequences use both cores.
    if _num_tensorcores() > 1 and n_rows > sublane and -(-n_rows // tn) == 1:
        tn = max(sublane, _round_up(-(-n_rows // 2), sublane))
    np_rows = _round_up(n_rows, tn)

    x_p = x2d
    if np_rows != n_rows or dp != model_dim:
        x_p = jnp.pad(x2d, ((0, np_rows - n_rows), (0, dp - model_dim)))

    grid = (np_rows // tn, fp // tff)
    out_is_f32 = jnp.dtype(dtype) == jnp.float32

    if out_is_f32:
        kernel = functools.partial(_ffn_kernel_direct, activation=activation)
        scratch = []
    else:
        kernel = functools.partial(_ffn_kernel_acc, activation=activation)
        scratch = [pltpu.VMEM((tn, dp), jnp.float32)]

    out_p = pl.pallas_call(
        kernel,
        out_shape=jax.ShapeDtypeStruct((np_rows, dp), dtype),
        grid_spec=pltpu.PrefetchScalarGridSpec(
            num_scalar_prefetch=0,
            grid=grid,
            in_specs=[
                pl.BlockSpec((tn, dp), lambda i, f: (i, 0)),        # x tile
                pl.BlockSpec((dp, tff), lambda i, f: (0, f)),       # W1 chunk
                pl.BlockSpec((1, tff), lambda i, f: (0, f)),        # b1 chunk
                pl.BlockSpec((tff, dp), lambda i, f: (f, 0)),       # W2 chunk
                pl.BlockSpec((1, dp), lambda i, f: (0, 0)),         # b2
            ],
            out_specs=pl.BlockSpec((tn, dp), lambda i, f: (i, 0)),
            scratch_shapes=scratch,
        ),
        compiler_params=pltpu.CompilerParams(
            dimension_semantics=("parallel", "arbitrary"),
            vmem_limit_bytes=plan.vmem_limit_bytes,
        ),
    )(x_p, w1p, b1p, w2p, b2p)

    out = out_p
    if np_rows != n_rows or dp != model_dim:
        out = out_p[:n_rows, :model_dim]
    return out.reshape(orig_shape)


# ---------------------------------------------------------------------------
# Reference + self-test.
# ---------------------------------------------------------------------------
def _reference(x, w1, b1, w2, b2, activation):
    f32 = jnp.float32
    h = x.reshape(-1, x.shape[-1]).astype(f32) @ w1.astype(f32) + b1.astype(f32)
    if activation == "relu":
        h = jnp.maximum(h, 0.0)
    else:  # exact erf GELU
        h = 0.5 * h * (1.0 + jax.lax.erf(h * 0.7071067811865476))
    out = h @ w2.astype(f32) + b2.astype(f32)
    return out.reshape(x.shape)


if __name__ == "__main__":
    key = jax.random.PRNGKey(0)
    (k_x, k_w1, k_b1, k_w2, k_b2,
     k_x2, k_w3, k_b3, k_w4, k_b4) = jax.random.split(key, 10)

    # --- FeedForwardBlock(model_dim=32, dim_feedforward=128, dropout=0.0) ---------
    seq, batch, model_dim, dim_ff = 8, 2, 32, 128
    bound1 = 1.0 / (model_dim ** 0.5)
    bound2 = 1.0 / (dim_ff ** 0.5)
    # (in, out) layout == transpose of PyTorch's (out, in) nn.Linear weights.
    w1 = jax.random.uniform(k_w1, (model_dim, dim_ff), jnp.float32, -bound1, bound1)
    b1 = jax.random.uniform(k_b1, (dim_ff,), jnp.float32, -bound1, bound1)
    w2 = jax.random.uniform(k_w2, (dim_ff, model_dim), jnp.float32, -bound2, bound2)
    b2 = jax.random.uniform(k_b2, (model_dim,), jnp.float32, -bound2, bound2)
    x = jax.random.normal(k_x, (seq, batch, model_dim), jnp.float32)

    for act in ("relu", "gelu"):
        out = jax.block_until_ready(
            feed_forward_block(x, w1, b1, w2, b2, activation=act))
        ref = _reference(x, w1, b1, w2, b2, act)
        assert out.shape == x.shape and out.dtype == x.dtype
        assert jnp.allclose(out, ref, atol=1e-4, rtol=1e-4), f"mismatch ({act})"

    # tanh-approximate GELU (EUP path) vs exact-erf reference: approximation-level tol
    out_t = jax.block_until_ready(
        feed_forward_block(x, w1, b1, w2, b2, activation="gelu_tanh"))
    assert jnp.allclose(out_t, _reference(x, w1, b1, w2, b2, "gelu"),
                        atol=2e-2, rtol=2e-2), "mismatch (gelu_tanh)"

    # --- multi-tile grid (token tiles x ff chunks) with pre-padded params ---------
    seq2, batch2, md2, ff2 = 16, 2, 64, 512
    bound3 = 1.0 / (md2 ** 0.5)
    bound4 = 1.0 / (ff2 ** 0.5)
    w3 = jax.random.uniform(k_w3, (md2, ff2), jnp.float32, -bound3, bound3)
    bb3 = jax.random.uniform(k_b3, (ff2,), jnp.float32, -bound3, bound3)
    w4 = jax.random.uniform(k_w4, (ff2, md2), jnp.float32, -bound4, bound4)
    bb4 = jax.random.uniform(k_b4, (md2,), jnp.float32, -bound4, bound4)
    x2 = jax.random.normal(k_x2, (seq2, batch2, md2), jnp.float32)

    plan = make_ffn_plan(md2, ff2, x2.dtype, n_rows_hint=seq2 * batch2,
                         tile_n=16, tile_ff=128)          # force a 2-D grid
    padded = pad_ffn_params(plan, w3, bb3, w4, bb4)       # hoisted out of hot path
    out2 = jax.block_until_ready(
        feed_forward_block(x2, w3, bb3, w4, bb4, activation="relu",
                           plan=plan, padded_params=padded))
    assert jnp.allclose(out2, _reference(x2, w3, bb3, w4, bb4, "relu"),
                        atol=1e-3, rtol=1e-3), "mismatch (multi-tile relu)"

    # --- bf16 path (f32 scratch accumulator, bf16 hidden on the MXU) --------------
    xb = x.astype(jnp.bfloat16)
    w1b, b1b, w2b, b2b = (a.astype(jnp.bfloat16) for a in (w1, b1, w2, b2))
    outb = jax.block_until_ready(
        feed_forward_block(xb, w1b, b1b, w2b, b2b, activation="gelu"))
    refb = _reference(xb, w1b, b1b, w2b, b2b, "gelu")
    assert outb.dtype == jnp.bfloat16
    assert jnp.allclose(outb.astype(jnp.float32), refb, atol=2e-2, rtol=2e-2), \
        "mismatch (bf16 gelu)"

    print("KERNEL_OK")
</pallas_src>

<mosaic_0001>
module attributes {stable_mosaic.version = 11 : i64} {
  func.func @_ffn_kernel_direct(%arg0: i32, %arg1: i32, %arg2: memref<16x128xf32, #tpu.memory_space<vmem>>, %arg3: memref<128x128xf32, #tpu.memory_space<vmem>>, %arg4: memref<1x128xf32, #tpu.memory_space<vmem>>, %arg5: memref<128x128xf32, #tpu.memory_space<vmem>>, %arg6: memref<1x128xf32, #tpu.memory_space<vmem>>, %arg7: memref<16x128xf32, #tpu.memory_space<vmem>>) attributes {dimension_semantics = [#tpu.dimension_semantics<parallel>, #tpu.dimension_semantics<arbitrary>], iteration_bounds = array<i64: 1, 1>, scalar_prefetch = 0 : i64, scratch_operands = 0 : i64, tpu.core_type = #tpu.core_type<tc>, window_params = [{transform_indices = @transform_0, window_bounds = array<i64: 16, 128>}, {transform_indices = @transform_1, window_bounds = array<i64: 128, 128>}, {transform_indices = @transform_2, window_bounds = array<i64: 1, 128>}, {transform_indices = @transform_3, window_bounds = array<i64: 128, 128>}, {pipeline_mode = #tpu.pipeline_mode<synchronous>, transform_indices = @transform_4, window_bounds = array<i64: 1, 128>}, {transform_indices = @transform_5, window_bounds = array<i64: 16, 128>}]} {
    %c0_i32 = arith.constant 0 : i32
    %0 = arith.cmpi eq, %arg1, %c0_i32 : i32
    %1 = arith.extui %0 : i1 to i32
    %c0_i32_0 = arith.constant 0 : i32
    %2 = arith.cmpi ne, %1, %c0_i32_0 : i32
    scf.if %2 {
      %cst_16 = arith.constant 0.000000e+00 : f32
      %19 = vector.broadcast %cst_16 : f32 to vector<16x128xf32>
      %c0_17 = arith.constant 0 : index
      %c0_18 = arith.constant 0 : index
      %20 = vector.load %arg7[%c0_17, %c0_18] : memref<16x128xf32, #tpu.memory_space<vmem>>, vector<16x128xf32>
      tpu.vector_store %arg7[%c0_17, %c0_18], %19 {strides = array<i32>} : memref<16x128xf32, #tpu.memory_space<vmem>>, vector<16x128xf32>,
    } else {
    }
    %c0 = arith.constant 0 : index
    %c0_1 = arith.constant 0 : index
    %3 = vector.load %arg2[%c0, %c0_1] : memref<16x128xf32, #tpu.memory_space<vmem>>, vector<16x128xf32>
    %c0_2 = arith.constant 0 : index
    %c0_3 = arith.constant 0 : index
    %4 = vector.load %arg3[%c0_2, %c0_3] : memref<128x128xf32, #tpu.memory_space<vmem>>, vector<128x128xf32>
    %cst = arith.constant dense<0.000000e+00> : vector<16x128xf32>
    %5 = tpu.matmul %3, %4, %cst {dimension_numbers = #tpu.dot_dimension_numbers<[1], [0], [0], [1], [0, 0, 1, 1], [], []>} : vector<16x128xf32>, vector<128x128xf32>, vector<16x128xf32> -> vector<16x128xf32>
    %c0_4 = arith.constant 0 : index
    %c0_5 = arith.constant 0 : index
    %6 = vector.load %arg4[%c0_4, %c0_5] : memref<1x128xf32, #tpu.memory_space<vmem>>, vector<1x128xf32>
    %7 = vector.broadcast %6 : vector<1x128xf32> to vector<16x128xf32>
    %8 = arith.addf %5, %7 : vector<16x128xf32>
    %cst_6 = arith.constant 0.000000e+00 : f32
    %9 = vector.broadcast %cst_6 : f32 to vector<16x128xf32>
    %10 = arith.maximumf %8, %9 : vector<16x128xf32>
    %c0_7 = arith.constant 0 : index
    %c0_8 = arith.constant 0 : index
    %11 = vector.load %arg7[%c0_7, %c0_8] : memref<16x128xf32, #tpu.memory_space<vmem>>, vector<16x128xf32>
    %c0_9 = arith.constant 0 : index
    %c0_10 = arith.constant 0 : index
    %12 = vector.load %arg5[%c0_9, %c0_10] : memref<128x128xf32, #tpu.memory_space<vmem>>, vector<128x128xf32>
    %cst_11 = arith.constant dense<0.000000e+00> : vector<16x128xf32>
    %13 = tpu.matmul %10, %12, %cst_11 {dimension_numbers = #tpu.dot_dimension_numbers<[1], [0], [0], [1], [0, 0, 1, 1], [], []>} : vector<16x128xf32>, vector<128x128xf32>, vector<16x128xf32> -> vector<16x128xf32>
    %14 = arith.addf %11, %13 : vector<16x128xf32>
    %c0_12 = arith.constant 0 : index
    %c0_13 = arith.constant 0 : index
    %15 = vector.load %arg7[%c0_12, %c0_13] : memref<16x128xf32, #tpu.memory_space<vmem>>, vector<16x128xf32>
    tpu.vector_store %arg7[%c0_12, %c0_13], %14 {strides = array<i32>} : memref<16x128xf32, #tpu.memory_space<vmem>>, vector<16x128xf32>,
    %c0_i32_14 = arith.constant 0 : i32
    %16 = arith.cmpi eq, %arg1, %c0_i32_14 : i32
    %17 = arith.extui %16 : i1 to i32
    %c0_i32_15 = arith.constant 0 : i32
    %18 = arith.cmpi ne, %17, %c0_i32_15 : i32
    scf.if %18 {
      %c0_16 = arith.constant 0 : index
      %c0_17 = arith.constant 0 : index
      %19 = vector.load %arg7[%c0_16, %c0_17] : memref<16x128xf32, #tpu.memory_space<vmem>>, vector<16x128xf32>
      %c0_18 = arith.constant 0 : index
      %c0_19 = arith.constant 0 : index
      %20 = vector.load %arg6[%c0_18, %c0_19] : memref<1x128xf32, #tpu.memory_space<vmem>>, vector<1x128xf32>
      %21 = vector.broadcast %20 : vector<1x128xf32> to vector<16x128xf32>
      %22 = arith.addf %19, %21 : vector<16x128xf32>
      %c0_20 = arith.constant 0 : index
      %c0_21 = arith.constant 0 : index
      %23 = vector.load %arg7[%c0_20, %c0_21] : memref<16x128xf32, #tpu.memory_space<vmem>>, vector<16x128xf32>
      tpu.vector_store %arg7[%c0_20, %c0_21], %22 {strides = array<i32>} : memref<16x128xf32, #tpu.memory_space<vmem>>, vector<16x128xf32>,
    } else {
    }
    return
  }
  func.func @transform_0(%arg0: i32, %arg1: i32) -> (i32, i32) {
    %c0_i32 = arith.constant 0 : i32
    %c0_i32_0 = arith.constant 0 : i32
    return %arg0, %c0_i32 : i32, i32
  }
  func.func @transform_1(%arg0: i32, %arg1: i32) -> (i32, i32) {
    %c0_i32 = arith.constant 0 : i32
    %c0_i32_0 = arith.constant 0 : i32
    return %c0_i32, %arg1 : i32, i32
  }
  func.func @transform_2(%arg0: i32, %arg1: i32) -> (i32, i32) {
    %c0_i32 = arith.constant 0 : i32
    %c0_i32_0 = arith.constant 0 : i32
    return %c0_i32, %arg1 : i32, i32
  }
  func.func @transform_3(%arg0: i32, %arg1: i32) -> (i32, i32) {
    %c0_i32 = arith.constant 0 : i32
    %c0_i32_0 = arith.constant 0 : i32
    return %arg1, %c0_i32 : i32, i32
  }
  func.func @transform_4(%arg0: i32, %arg1: i32) -> (i32, i32) {
    %c0_i32 = arith.constant 0 : i32
    %c0_i32_0 = arith.constant 0 : i32
    %c0_i32_1 = arith.constant 0 : i32
    return %c0_i32, %c0_i32_0 : i32, i32
  }
  func.func @transform_5(%arg0: i32, %arg1: i32) -> (i32, i32) {
    %c0_i32 = arith.constant 0 : i32
    %c0_i32_0 = arith.constant 0 : i32
    return %arg0, %c0_i32 : i32, i32
  }
}

</mosaic_0001>

<llo_original>
// kernel: tpu_custom_call.1
$region0: #{tpu_custom_call.1}
  #allocation0 [shape = 'u32[]', space=smem, size = 0x4, offset = 0x4, fixed_abs, tag = 'smem constant byte address 0x4 - core index']
  #allocation1 [shape = 'u32[144,128]{1,0:T(1,128)}', space=vmem, size = 0x12000, scoped, tag = 'internal scratch']
  %s0 = inlined_call_operand.hbm [shape: f32[16,128], index: 0, kind: input, shape index: {}]
  %s1 = inlined_call_operand.hbm [shape: f32[128,128], index: 1, kind: input, shape index: {}]
  %s2 = inlined_call_operand.vmem [shape: f32[1,128], index: 2, kind: input, shape index: {}]
  %s3 = inlined_call_operand.hbm [shape: f32[128,128], index: 3, kind: input, shape index: {}]
  %s4 = inlined_call_operand.vmem [shape: f32[1,128], index: 4, kind: input, shape index: {}]
  %s5 = inlined_call_operand.hbm [shape: f32[16,128], index: 5, kind: output, shape index: {}]
  %s6 = sld [smem:[#allocation0]]
  $region50: #{tpu_custom_call.1} parent=0
    _
  %s8 = ssub.s32 1, %s6
  %s9 = scalar_select 0, %s8, %s6
  $region1: #{tpu_custom_call.1} parent=0
    #allocation2 [shape = 'u8[8192]{0}', space=vmem, size = 0x2000, scoped, tag = 'input window, operand 0, single buffered']
    #allocation3 [shape = 's32[1]{0}', space=sflag, size = 0x4, scoped, tag = 'scoped memory for tpu_custom_call.1']
    #allocation4 [shape = 's32[1]{0}', space=sflag, size = 0x4, scoped, tag = 'scoped memory for tpu_custom_call.1']
    #allocation5 [shape = 'u8[65536]{0}', space=vmem, size = 0x10000, scoped, tag = 'input window, operand 1, single buffered']
    #allocation6 [shape = 's32[1]{0}', space=sflag, size = 0x4, scoped, tag = 'scoped memory for tpu_custom_call.1']
    #allocation7 [shape = 'u8[65536]{0}', space=vmem, size = 0x10000, scoped, tag = 'input window, operand 3, single buffered']
    #allocation8 [shape = 'u8[8192]{0}', space=vmem, size = 0x2000, scoped, tag = 'output window, operand 0, single buffered']
    %10 = vsyncpa [#allocation3], 0
    %11 = vsyncpa [#allocation6], 0
    %12 = vsyncpa [#allocation4], 0
    // Predicated region
    $region2: #{tpu_custom_call.1} parent=1 // pred_check
      _
    $region3: #{tpu_custom_call.1} parent=1 // pred_check_branch
      %14 = sbr.rel (0) target = $region5
    $region4: #{tpu_custom_call.1} parent=1 // pred_region
      %s16 = ssub.s32 256, 256
      %17 = vsyncadd [#allocation3], %s16
      %s18 = sshll.u32 [#allocation2], 4
      %s19 = int_to_ptr.vmem [resolvable:$true] %s18
      %24 = dma.hbm_to_vmem [thread:$0]  %s0, 256, %s19, [#allocation3], 128, 128, 8
    $region5: #{tpu_custom_call.1} parent=1 // pred_fallthru
      _
    // Predicated region
    $region6: #{tpu_custom_call.1} parent=1 // pred_check
      _
    $region7: #{tpu_custom_call.1} parent=1 // pred_check_branch
      %26 = sbr.rel (0) target = $region9
    $region8: #{tpu_custom_call.1} parent=1 // pred_region
      %s28 = ssub.s32 2048, 2048
      %29 = vsyncadd [#allocation6], %s28
      %s30 = sshll.u32 [#allocation5], 4
      %s31 = int_to_ptr.vmem [resolvable:$true] %s30
      %36 = dma.hbm_to_vmem [thread:$0]  %s1, 2048, %s31, [#allocation6], 128, 128, 8
    $region9: #{tpu_custom_call.1} parent=1 // pred_fallthru
      _
    // Predicated region
    $region10: #{tpu_custom_call.1} parent=1 // pred_check
      _
    $region11: #{tpu_custom_call.1} parent=1 // pred_check_branch
      %38 = sbr.rel (0) target = $region13
    $region12: #{tpu_custom_call.1} parent=1 // pred_region
      _
    $region13: #{tpu_custom_call.1} parent=1 // pred_fallthru
      _
    // Predicated region
    $region14: #{tpu_custom_call.1} parent=1 // pred_check
      _
    $region15: #{tpu_custom_call.1} parent=1 // pred_check_branch
      %40 = sbr.rel (0) target = $region17
    $region16: #{tpu_custom_call.1} parent=1 // pred_region
      %s42 = ssub.s32 2048, 2048
      %43 = vsyncadd [#allocation6], %s42
      %s44 = sshll.u32 [#allocation7], 4
      %s45 = int_to_ptr.vmem [resolvable:$true] %s44
      %50 = dma.hbm_to_vmem [thread:$0]  %s3, 2048, %s45, [#allocation6], 128, 128, 8
    $region17: #{tpu_custom_call.1} parent=1 // pred_fallthru
      _
    // Predicated region
    $region18: #{tpu_custom_call.1} parent=1 // pred_check
      _
    $region19: #{tpu_custom_call.1} parent=1 // pred_check_branch
      %52 = sbr.rel (0) target = $region21
    $region20: #{tpu_custom_call.1} parent=1 // pred_region
      _
    $region21: #{tpu_custom_call.1} parent=1 // pred_fallthru
      _
    // Predicated region
    $region22: #{tpu_custom_call.1} parent=1 // pred_check
      _
    $region23: #{tpu_custom_call.1} parent=1 // pred_check_branch
      %54 = sbr.rel (0) target = $region25
    $region24: #{tpu_custom_call.1} parent=1 // pred_region
      %55 = dma.done [#allocation3], 256
    $region25: #{tpu_custom_call.1} parent=1 // pred_fallthru
      _
    // Predicated region
    $region26: #{tpu_custom_call.1} parent=1 // pred_check
      _
    $region27: #{tpu_custom_call.1} parent=1 // pred_check_branch
      %57 = sbr.rel (0) target = $region29
    $region28: #{tpu_custom_call.1} parent=1 // pred_region
      %58 = dma.done [#allocation6], 2048
    $region29: #{tpu_custom_call.1} parent=1 // pred_fallthru
      _
    // Predicated region
    $region30: #{tpu_custom_call.1} parent=1 // pred_check
      _
    $region31: #{tpu_custom_call.1} parent=1 // pred_check_branch
      %60 = sbr.rel (0) target = $region33
    $region32: #{tpu_custom_call.1} parent=1 // pred_region
      %61 = dma.done [#allocation6], 2048
    $region33: #{tpu_custom_call.1} parent=1 // pred_fallthru
      _
    %p62 = scmp.eq.s32.totalorder 0, 0
    // Predicated region
    $region34: #{tpu_custom_call.1} parent=1 // pred_check
      %p63 = pneg %p62
    $region35: #{tpu_custom_call.1} parent=1 // pred_check_branch
      %65 = sbr.rel (%p63) target = $region37
    $region36: #{tpu_custom_call.1} parent=1 // pred_region
      %66 = vst [vmem:[#allocation8] sm:$0xff] 0.0
      %67 = vst [vmem:[#allocation8 + $0x8] sm:$0xff] 0.0
    $region37: #{tpu_custom_call.1} parent=1 // pred_fallthru
      _
    %v68 = vld [vmem:[#allocation2] sm:$0xff]
    %v69 = vld [vmem:[#allocation2 + $0x8] sm:$0xff]
    %v70 = vld [vmem:[#allocation5] sm:$0xff]
    %v71 = vld [vmem:[#allocation5 + $0x8] sm:$0xff]
    %v72 = vld [vmem:[#allocation5 + $0x10] sm:$0xff]
    %v73 = vld [vmem:[#allocation5 + $0x18] sm:$0xff]
    %v74 = vld [vmem:[#allocation5 + $0x20] sm:$0xff]
    %v75 = vld [vmem:[#allocation5 + $0x28] sm:$0xff]
    %v76 = vld [vmem:[#allocation5 + $0x30] sm:$0xff]
    %v77 = vld [vmem:[#allocation5 + $0x38] sm:$0xff]
    %v78 = vld [vmem:[#allocation5 + $0x40] sm:$0xff]
    %v79 = vld [vmem:[#allocation5 + $0x48] sm:$0xff]
    %v80 = vld [vmem:[#allocation5 + $0x50] sm:$0xff]
    %v81 = vld [vmem:[#allocation5 + $0x58] sm:$0xff]
    %v82 = vld [vmem:[#allocation5 + $0x60] sm:$0xff]
    %v83 = vld [vmem:[#allocation5 + $0x68] sm:$0xff]
    %v84 = vld [vmem:[#allocation5 + $0x70] sm:$0xff]
    %v85 = vld [vmem:[#allocation5 + $0x78] sm:$0xff]
    %v86 = vld [vmem:[%s2] sm:$0x1]
    %v88 = vlaneseq
    %v89 = vshrl.u32 %v88, 7
    %v90 = vsub.s32 0, %v89
    %v91 = vrot.slane %v86, %v90
    %93 = vmatprep.subr.mxu0 0.0
    %94 = vmatpush1.msra.mxu0 %v85
    %95 = vmatprep.subr.mxu0 0.0
    %96 = vmatpush1.msra.mxu0 %v84
    %97 = vmatprep.subr.mxu0 0.0
    %98 = vmatpush1.msra.mxu0 %v83
    %99 = vmatprep.subr.mxu0 0.0
    %100 = vmatpush1.msra.mxu0 %v82
    %101 = vmatprep.subr.mxu0 0.0
    %102 = vmatpush1.msra.mxu0 %v81
    %103 = vmatprep.subr.mxu0 0.0
    %104 = vmatpush1.msra.mxu0 %v80
    %105 = vmatprep.subr.mxu0 0.0
    %106 = vmatpush1.msra.mxu0 %v79
    %107 = vmatprep.subr.mxu0 0.0
    %108 = vmatpush1.msra.mxu0 %v78
    %109 = vmatprep.subr.mxu0 0.0
    %110 = vmatpush1.msra.mxu0 %v77
    %111 = vmatprep.subr.mxu0 0.0
    %112 = vmatpush1.msra.mxu0 %v76
    %113 = vmatprep.subr.mxu0 0.0
    %114 = vmatpush1.msra.mxu0 %v75
    %115 = vmatprep.subr.mxu0 0.0
    %116 = vmatpush1.msra.mxu0 %v74
    %117 = vmatprep.subr.mxu0 0.0
    %118 = vmatpush1.msra.mxu0 %v73
    %119 = vmatprep.subr.mxu0 0.0
    %120 = vmatpush1.msra.mxu0 %v72
    %121 = vmatprep.subr.mxu0 0.0
    %122 = vmatpush1.msra.mxu0 %v71
    %123 = vmatprep.subr.mxu0 0.0
    %124 = vmatpush1.msra.mxu0 %v70
    %125 = vmatprep.subr.mxu0 0.0
    %126 = vmatpush2.msra.mxu0 0.0
    %127 = vmatprep.subr.mxu0 0.0
    %128 = vmatpush2.msra.mxu0 0.0
    %129 = vmatprep.subr.mxu0 0.0
    %130 = vmatpush2.msra.mxu0 0.0
    %131 = vmatprep.subr.mxu0 0.0
    %132 = vmatpush2.msra.mxu0 0.0
    %133 = vmatprep.subr.mxu0 0.0
    %134 = vmatpush2.msra.mxu0 0.0
    %135 = vmatprep.subr.mxu0 0.0
    %136 = vmatpush2.msra.mxu0 0.0
    %137 = vmatprep.subr.mxu0 0.0
    %138 = vmatpush2.msra.mxu0 0.0
    %139 = vmatprep.subr.mxu0 0.0
    %140 = vmatpush2.msra.mxu0 0.0
    %141 = vmatprep.subr.mxu0 0.0
    %142 = vmatpush2.msra.mxu0 0.0
    %143 = vmatprep.subr.mxu0 0.0
    %144 = vmatpush2.msra.mxu0 0.0
    %145 = vmatprep.subr.mxu0 0.0
    %146 = vmatpush2.msra.mxu0 0.0
    %147 = vmatprep.subr.mxu0 0.0
    %148 = vmatpush2.msra.mxu0 0.0
    %149 = vmatprep.subr.mxu0 0.0
    %150 = vmatpush2.msra.mxu0 0.0
    %151 = vmatprep.subr.mxu0 0.0
    %152 = vmatpush2.msra.mxu0 0.0
    %153 = vmatprep.subr.mxu0 0.0
    %154 = vmatpush2.msra.mxu0 0.0
    %155 = vmatprep.subr.mxu0 0.0
    %156 = vmatpush2.msra.mxu0 0.0
    %157 = vmatprep.mubr.f32.mxu0 0.0
    %158 = vmatmul.mubr.f32.gmra.mxu0 %v68
    %v159 = vpop.f32.mrf.mxu0
    %v160 = vadd.f32 %v91, %v159
    %v161 = vpop.f32.mrf.mxu0
    %162 = vmatprep.mubr.f32.mxu0 0.0
    %163 = vmatmul.mubr.f32.gmra.mxu0 %v69
    %v164 = vpop.f32.mrf.mxu0
    %v165 = vadd.f32 %v91, %v164
    %v166 = vpop.f32.mrf.mxu0
    %167 = vdwg.mxu0
    %v168 = vmax.f32 %v160, 0.0
    %v169 = vmax.f32 %v165, 0.0
    %v170 = vld [vmem:[#allocation8] sm:$0xff]
    %v171 = vld [vmem:[#allocation8 + $0x8] sm:$0xff]
    %v172 = vld [vmem:[#allocation7] sm:$0xff]
    %v173 = vld [vmem:[#allocation7 + $0x8] sm:$0xff]
    %v174 = vld [vmem:[#allocation7 + $0x10] sm:$0xff]
    %v175 = vld [vmem:[#allocation7 + $0x18] sm:$0xff]
    %v176 = vld [vmem:[#allocation7 + $0x20] sm:$0xff]
    %v177 = vld [vmem:[#allocation7 + $0x28] sm:$0xff]
    %v178 = vld [vmem:[#allocation7 + $0x30] sm:$0xff]
    %v179 = vld [vmem:[#allocation7 + $0x38] sm:$0xff]
    %v180 = vld [vmem:[#allocation7 + $0x40] sm:$0xff]
    %v181 = vld [vmem:[#allocation7 + $0x48] sm:$0xff]
    %v182 = vld [vmem:[#allocation7 + $0x50] sm:$0xff]
    %v183 = vld [vmem:[#allocation7 + $0x58] sm:$0xff]
    %v184 = vld [vmem:[#allocation7 + $0x60] sm:$0xff]
    %v185 = vld [vmem:[#allocation7 + $0x68] sm:$0xff]
    %v186 = vld [vmem:[#allocation7 + $0x70] sm:$0xff]
    %v187 = vld [vmem:[#allocation7 + $0x78] sm:$0xff]
    %188 = vmatprep.subr.mxu0 0.0
    %189 = vmatpush1.msra.mxu0 %v187
    %190 = vmatprep.subr.mxu0 0.0
    %191 = vmatpush1.msra.mxu0 %v186
    %192 = vmatprep.subr.mxu0 0.0
    %193 = vmatpush1.msra.mxu0 %v185
    %194 = vmatprep.subr.mxu0 0.0
    %195 = vmatpush1.msra.mxu0 %v184
    %196 = vmatprep.subr.mxu0 0.0
    %197 = vmatpush1.msra.mxu0 %v183
    %198 = vmatprep.subr.mxu0 0.0
    %199 = vmatpush1.msra.mxu0 %v182
    %200 = vmatprep.subr.mxu0 0.0
    %201 = vmatpush1.msra.mxu0 %v181
    %202 = vmatprep.subr.mxu0 0.0
    %203 = vmatpush1.msra.mxu0 %v180
    %204 = vmatprep.subr.mxu0 0.0
    %205 = vmatpush1.msra.mxu0 %v179
    %206 = vmatprep.subr.mxu0 0.0
    %207 = vmatpush1.msra.mxu0 %v178
    %208 = vmatprep.subr.mxu0 0.0
    %209 = vmatpush1.msra.mxu0 %v177
    %210 = vmatprep.subr.mxu0 0.0
    %211 = vmatpush1.msra.mxu0 %v176
    %212 = vmatprep.subr.mxu0 0.0
    %213 = vmatpush1.msra.mxu0 %v175
    %214 = vmatprep.subr.mxu0 0.0
    %215 = vmatpush1.msra.mxu0 %v174
    %216 = vmatprep.subr.mxu0 0.0
    %217 = vmatpush1.msra.mxu0 %v173
    %218 = vmatprep.subr.mxu0 0.0
    %219 = vmatpush1.msra.mxu0 %v172
    %220 = vmatprep.subr.mxu0 0.0
    %221 = vmatpush2.msra.mxu0 0.0
    %222 = vmatprep.subr.mxu0 0.0
    %223 = vmatpush2.msra.mxu0 0.0
    %224 = vmatprep.subr.mxu0 0.0
    %225 = vmatpush2.msra.mxu0 0.0
    %226 = vmatprep.subr.mxu0 0.0
    %227 = vmatpush2.msra.mxu0 0.0
    %228 = vmatprep.subr.mxu0 0.0
    %229 = vmatpush2.msra.mxu0 0.0
    %230 = vmatprep.subr.mxu0 0.0
    %231 = vmatpush2.msra.mxu0 0.0
    %232 = vmatprep.subr.mxu0 0.0
    %233 = vmatpush2.msra.mxu0 0.0
    %234 = vmatprep.subr.mxu0 0.0
    %235 = vmatpush2.msra.mxu0 0.0
    %236 = vmatprep.subr.mxu0 0.0
    %237 = vmatpush2.msra.mxu0 0.0
    %238 = vmatprep.subr.mxu0 0.0
    %239 = vmatpush2.msra.mxu0 0.0
    %240 = vmatprep.subr.mxu0 0.0
    %241 = vmatpush2.msra.mxu0 0.0
    %242 = vmatprep.subr.mxu0 0.0
    %243 = vmatpush2.msra.mxu0 0.0
    %244 = vmatprep.subr.mxu0 0.0
    %245 = vmatpush2.msra.mxu0 0.0
    %246 = vmatprep.subr.mxu0 0.0
    %247 = vmatpush2.msra.mxu0 0.0
    %248 = vmatprep.subr.mxu0 0.0
    %249 = vmatpush2.msra.mxu0 0.0
    %250 = vmatprep.subr.mxu0 0.0
    %251 = vmatpush2.msra.mxu0 0.0
    %252 = vmatprep.mubr.f32.mxu0 0.0
    %253 = vmatmul.mubr.f32.gmra.mxu0 %v168
    %v254 = vpop.f32.mrf.mxu0
    %v255 = vadd.f32 0.0, %v254
    %v256 = vpop.f32.mrf.mxu0
    %257 = vmatprep.mubr.f32.mxu0 0.0
    %258 = vmatmul.mubr.f32.gmra.mxu0 %v169
    %v259 = vpop.f32.mrf.mxu0
    %v260 = vadd.f32 0.0, %v259
    %v261 = vpop.f32.mrf.mxu0
    %262 = vdwg.mxu0
    %v263 = vadd.f32 %v170, %v255
    %v264 = vadd.f32 %v171, %v260
    %265 = vst [vmem:[#allocation8] sm:$0xff] %v263
    %266 = vst [vmem:[#allocation8 + $0x8] sm:$0xff] %v264
    // Predicated region
    $region38: #{tpu_custom_call.1} parent=1 // pred_check
      %p267 = pneg %p62
    $region39: #{tpu_custom_call.1} parent=1 // pred_check_branch
      %269 = sbr.rel (%p267) target = $region41
    $region40: #{tpu_custom_call.1} parent=1 // pred_region
      %v270 = vld [vmem:[#allocation8] sm:$0xff]
      %v271 = vld [vmem:[#allocation8 + $0x8] sm:$0xff]
      %v272 = vld [vmem:[%s4] sm:$0x1]
      %v274 = vlaneseq
      %v275 = vshrl.u32 %v274, 7
      %v276 = vsub.s32 0, %v275
      %v277 = vrot.slane %v272, %v276
      %v279 = vadd.f32 %v270, %v277
      %v280 = vadd.f32 %v271, %v277
      %281 = vst [vmem:[#allocation8] sm:$0xff] %v279
      %282 = vst [vmem:[#allocation8 + $0x8] sm:$0xff] %v280
    $region41: #{tpu_custom_call.1} parent=1 // pred_fallthru
      _
    // Predicated region
    $region42: #{tpu_custom_call.1} parent=1 // pred_check
      _
    $region43: #{tpu_custom_call.1} parent=1 // pred_check_branch
      %284 = sbr.rel (0) target = $region45
    $region44: #{tpu_custom_call.1} parent=1 // pred_region
      %s286 = ssub.s32 256, 256
      %287 = vsyncadd [#allocation4], %s286
      %s288 = sshll.u32 [#allocation8], 4
      %s289 = int_to_ptr.vmem [resolvable:$true] %s288
      %294 = dma.vmem_to_hbm [thread:$0]  %s289, 256, %s5, [#allocation4], 128, 128, 8
    $region45: #{tpu_custom_call.1} parent=1 // pred_fallthru
      _
    // Predicated region
    $region46: #{tpu_custom_call.1} parent=1 // pred_check
      _
    $region47: #{tpu_custom_call.1} parent=1 // pred_check_branch
      %296 = sbr.rel (0) target = $region49
    $region48: #{tpu_custom_call.1} parent=1 // pred_region
      %297 = dma.done [#allocation4], 256
    $region49: #{tpu_custom_call.1} parent=1 // pred_fallthru
      _
    %298 = vsyncpa [#allocation3], 1
    %299 = vsyncpa [#allocation6], 1
    %300 = vsyncpa [#allocation4], 1

</llo_original>
